<compile_context>
chip_gen: v6e
topology: v6e:2x2x1
jax: 0.10.0
libtpu: 0.0.40
codegen_flags: <defaults>
</compile_context>

<pallas_src>
import numpy as np
import jax
import jax.numpy as jnp
from jax import lax
from jax.experimental import pallas as pl
from jax.experimental.pallas import tpu as pltpu

# ---- constants from the PyTorch module -------------------------------------
ALPHA = 0.25          # focal loss alpha
FOCAL_EPS = 1e-5      # focal loss eps
MU = 0.02             # GHMR mu
BINS = 10             # GHMR bins
MOMENTUM = 0.7        # GHMR momentum
EDGES = [float(x) / BINS for x in range(BINS + 1)]
EDGES[-1] = 1000.0

SUB = 8               # sublanes per f32 vreg
ACC_L = 128           # lane width of the in-kernel compute chunk / output acc
NSTAT = 2 + 2 * BINS  # focal sum, valid count, BINS counts, BINS loss sums


def _detect_tensorcores():
    """Best-effort TensorCores-per-chip (2 on v7x, 1 on v5e/v6e); safe fallback 1."""
    try:
        info = pltpu.get_tpu_info()
    except Exception:
        return 1
    for name in ("num_tensorcores", "tensorcores_per_chip", "num_cores",
                 "cores_per_chip", "tensorcore_count"):
        v = getattr(info, name, None)
        if isinstance(v, (int, np.integer)) and 1 <= int(v) <= 8:
            return min(int(v), 2)
    return 1


def _make_ghm_kernel(n_valid_lanes, needs_mask):
    """Builds the kernel for a given true lane count / tail-mask requirement."""

    def kernel(p_ref, t_ref, acc_ref):
        # p_ref, t_ref: (C, 8, lt) blocks; acc_ref: (1, NSTAT, 8, ACC_L)
        #   acc rows: 0 focal-loss sum, 1 valid count,
        #             2..2+BINS-1 per-bin element counts,
        #             2+BINS..    per-bin GHMR loss sums.
        @pl.when(pl.program_id(1) == 0)
        def _init():
            acc_ref[...] = jnp.zeros_like(acc_ref)

        lt = p_ref.shape[2]
        n_chunks = lt // ACC_L                       # static

        if needs_mask:
            base = (pl.program_id(0) * pl.num_programs(1) + pl.program_id(1)) * lt
            lane_iota = lax.broadcasted_iota(jnp.int32, (SUB, ACC_L), 1)

        def chunk(j, carry):
            focal_acc, valid_acc, cnt, los = carry
            start = pl.multiple_of(j * ACC_L, ACC_L)
            pv = p_ref[:, :, pl.ds(start, ACC_L)]    # (C, 8, ACC_L)
            tv = t_ref[:, :, pl.ds(start, ACC_L)]
            x, y = pv[0], tv[0]                      # cls prediction / target

            # ---- focal loss (focal_loss_ver == 0, mask = 1) -----------------
            pos = y > 0.5
            x_t = jnp.where(pos, x, 1.0 - x)         # x*(2y-1)+(1-y) for y in {0,1}
            alpha_t = jnp.where(pos, ALPHA, 1.0 - ALPHA)
            one_m = 1.0 - x_t
            fl = -alpha_t * one_m * one_m * jnp.log(x_t + FOCAL_EPS)
            valid = y > 0.1

            if needs_mask:
                lane_ok = (lane_iota + (base + start)) < n_valid_lanes
                fl = jnp.where(lane_ok, fl, 0.0)     # select (no NaN*0 hazard)
                valid = jnp.logical_and(valid, lane_ok)

            focal_acc = focal_acc + fl
            valid_acc = valid_acc + jnp.where(valid, 1.0, 0.0)

            # ---- GHMR statistics --------------------------------------------
            dp, dt = pv[1:], tv[1:]                  # (4, 8, ACC_L)
            diff = dp - dt
            s = diff * diff + MU * MU
            r = lax.rsqrt(s)                         # EUP; frees VPU vs sqrt+div
            g = jnp.abs(diff) * r                    # gradient norm in [0, 1)
            loss = s * r - MU                        # sqrt(diff^2 + mu^2) - mu

            # bin index via floor(g*BINS); -1 marks invalid so it matches no bin
            bidx = jnp.minimum(jnp.floor(g * BINS), float(BINS - 1))
            bidx = jnp.where(valid[None, :, :], bidx, -1.0)

            new_cnt, new_los = [], []
            for i in range(BINS):
                in_bin = bidx == float(i)
                # channel-axis sums are plain VPU adds (no cross-lane XLU work)
                new_cnt.append(cnt[i] + jnp.sum(jnp.where(in_bin, 1.0, 0.0), axis=0))
                new_los.append(los[i] + jnp.sum(jnp.where(in_bin, loss, 0.0), axis=0))
            return focal_acc, valid_acc, tuple(new_cnt), tuple(new_los)

        zero = jnp.zeros((SUB, ACC_L), jnp.float32)
        init = (zero, zero, (zero,) * BINS, (zero,) * BINS)
        focal_acc, valid_acc, cnt, los = lax.fori_loop(0, n_chunks, chunk, init)

        # fold vreg-resident partials into the VMEM accumulator once per step
        acc_ref[0, 0] += focal_acc
        acc_ref[0, 1] += valid_acc
        for i in range(BINS):
            acc_ref[0, 2 + i] += cnt[i]
            acc_ref[0, 2 + BINS + i] += los[i]

    return kernel


def ghm_loss_forward(preds, targets, *, lanes_per_step=8192, num_cores=None):
    """Pallas implementation of GHM_Loss.forward.

    preds, targets: float [B, H, W, 1 + 4].
    Returns (cls_loss + reg_loss, reg_loss, cls_loss) as scalars.
    Call under jax.jit so the (pad +) channels-first transpose fuses into a
    single copy.
    """
    B, H, W, C = targets.shape
    n = B * H * W

    p2 = preds.astype(jnp.float32).reshape(n, C)
    t2 = targets.astype(jnp.float32).reshape(n, C)

    # Round pixel count up to a multiple of 8*128 so the lane axis of the
    # (C, 8, nsub) layout is 128-aligned.  The <= 1023 zero pixels contribute
    # exactly 0 to every statistic; padding happens BEFORE the transpose so it
    # rides along the layout-change copy that is needed anyway.
    n_al = -(-n // (SUB * 128)) * (SUB * 128)
    if n_al != n:
        p2 = jnp.pad(p2, ((0, n_al - n), (0, 0)))
        t2 = jnp.pad(t2, ((0, n_al - n), (0, 0)))
    nsub = n_al // SUB                               # lane count, multiple of 128

    # TODO(synk): if upstream can hand over channels-first data, this transpose
    # copy disappears entirely.
    P = p2.T.reshape(C, SUB, nsub)                   # sublane/lane-dense layout
    T = t2.T.reshape(C, SUB, nsub)

    # DMA lane tile (multiple of 128). In-kernel compute chunking is decoupled
    # from it, so large tiles only amortize the ~0.35us per-grid-step overhead.
    lanes_per_step = max(ACC_L, (lanes_per_step // ACC_L) * ACC_L)
    lt = min(lanes_per_step, nsub)
    total_blocks = -(-nsub // lt)

    nc = _detect_tensorcores() if num_cores is None else max(1, int(num_cores))
    if total_blocks < nc:
        nc = 1
    steps = -(-total_blocks // nc)
    max_blk = total_blocks - 1
    needs_mask = (nc * steps * lt) != nsub           # ragged tail / clamped blocks

    def in_idx(c, i):
        # clamp fully-out-of-range steps to the last real block; the in-kernel
        # lane mask zeroes their contribution.
        return (0, 0, jnp.minimum(c * steps + i, max_blk))

    kernel = _make_ghm_kernel(nsub, needs_mask)

    acc = pl.pallas_call(
        kernel,
        out_shape=jax.ShapeDtypeStruct((nc, NSTAT, SUB, ACC_L), jnp.float32),
        grid_spec=pltpu.PrefetchScalarGridSpec(
            num_scalar_prefetch=0,
            grid=(nc, steps),
            in_specs=[
                pl.BlockSpec((C, SUB, lt), in_idx),
                pl.BlockSpec((C, SUB, lt), in_idx),
            ],
            out_specs=pl.BlockSpec((1, NSTAT, SUB, ACC_L),
                                   lambda c, i: (c, 0, 0, 0)),
        ),
        compiler_params=pltpu.CompilerParams(
            dimension_semantics=("parallel", "arbitrary"),
            vmem_limit_bytes=32 * 1024 * 1024),
    )(P, T)

    # final tiny reduction + GHMR weight arithmetic in plain JAX
    totals = jnp.sum(acc, axis=(0, 2, 3))            # (NSTAT,)
    focal_sum = totals[0]
    valid_sum = totals[1]
    counts = totals[2:2 + BINS]
    loss_sums = totals[2 + BINS:2 + 2 * BINS]

    cls_loss = focal_sum / (B * H * W)

    tot = jnp.maximum(valid_sum, 1.0)
    acc_sum = (1.0 - MOMENTUM) * counts
    safe_acc = jnp.where(counts > 0, acc_sum, 1.0)
    w = jnp.where(counts > 0, tot / safe_acc, 0.0)
    n_bins = jnp.sum(jnp.where(counts > 0, 1.0, 0.0))
    n_div = jnp.where(n_bins > 0, n_bins, 1.0)
    reg_loss = jnp.sum(w * loss_sums) / n_div / tot

    return cls_loss + reg_loss, reg_loss, cls_loss


# ---- pure-numpy reference mirroring the PyTorch code ------------------------
def reference_forward(preds, targets):
    preds = np.asarray(preds, np.float32)
    targets = np.asarray(targets, np.float32)
    B, H, W, C = targets.shape
    cls_p, loc_p = preds[..., 0:1], preds[..., 1:]
    cls_t, loc_t = targets[..., 0:1], targets[..., 1:]

    # focal loss (ver 0, mask = 1)
    x_t = cls_p * (2 * cls_t - 1) + (1 - cls_t)
    alpha_t = ALPHA * (2 * cls_t - 1) + (1 - cls_t)
    cls_loss = np.sum(-alpha_t * (1 - x_t) ** 2 * np.log(x_t + FOCAL_EPS)) / (B * H * W)

    # GHMR
    ip = loc_p.reshape(-1, C - 1)
    it = loc_t.reshape(-1, C - 1)
    mask = cls_t.reshape(-1, 1)
    diff = ip - it
    loss = np.sqrt(diff * diff + MU * MU) - MU
    g = np.abs(diff / np.sqrt(MU * MU + diff * diff))
    weights = np.zeros_like(g)
    valid = mask > 0.1
    tot = max(float(valid.astype(np.float32).sum()), 1.0)
    acc_sum = [0.0] * BINS
    n = 0
    for i in range(BINS):
        inds = (g >= EDGES[i]) & (g < EDGES[i + 1]) & valid
        num = int(inds.sum())
        if num > 0:
            n += 1
            acc_sum[i] = MOMENTUM * acc_sum[i] + (1 - MOMENTUM) * num
            weights[inds] = tot / acc_sum[i]
    if n > 0:
        weights = weights / n
    reg_loss = float((loss * weights).sum() / tot)
    return float(cls_loss) + reg_loss, reg_loss, float(cls_loss)


if __name__ == "__main__":
    key = jax.random.PRNGKey(0)
    k1, k2, k3, k4 = jax.random.split(key, 4)
    B, H, W = 2, 16, 16

    cls_preds = jax.nn.sigmoid(jax.random.normal(k1, (B, H, W, 1)))
    loc_preds = jax.random.normal(k2, (B, H, W, 4))
    preds = jnp.concatenate([cls_preds, loc_preds], axis=-1).astype(jnp.float32)

    cls_targets = jax.random.bernoulli(k3, 0.3, (B, H, W, 1)).astype(jnp.float32)
    loc_targets = loc_preds + 0.03 * jax.random.normal(k4, (B, H, W, 4))
    targets = jnp.concatenate([cls_targets, loc_targets], axis=-1).astype(jnp.float32)

    fwd = jax.jit(ghm_loss_forward)
    total, reg, cls = fwd(preds, targets)
    jax.block_until_ready((total, reg, cls))

    ref_total, ref_reg, ref_cls = reference_forward(preds, targets)
    np.testing.assert_allclose(float(total), ref_total, rtol=2e-3, atol=1e-5)
    np.testing.assert_allclose(float(reg), ref_reg, rtol=2e-3, atol=1e-5)
    np.testing.assert_allclose(float(cls), ref_cls, rtol=2e-3, atol=1e-5)

    print("KERNEL_OK")
</pallas_src>

<mosaic_0001>
module attributes {stable_mosaic.version = 11 : i64} {
  func.func @kernel(%arg0: i32, %arg1: i32, %arg2: memref<5x8x128xf32, #tpu.memory_space<vmem>>, %arg3: memref<5x8x128xf32, #tpu.memory_space<vmem>>, %arg4: memref<1x22x8x128xf32, #tpu.memory_space<vmem>>) attributes {dimension_semantics = [#tpu.dimension_semantics<parallel>, #tpu.dimension_semantics<arbitrary>], iteration_bounds = array<i64: 1, 1>, scalar_prefetch = 0 : i64, scratch_operands = 0 : i64, tpu.core_type = #tpu.core_type<tc>, window_params = [{transform_indices = @transform_0, window_bounds = array<i64: 5, 8, 128>}, {transform_indices = @transform_1, window_bounds = array<i64: 5, 8, 128>}, {transform_indices = @transform_2, window_bounds = array<i64: 1, 22, 8, 128>}]} {
    %c0_i32 = arith.constant 0 : i32
    %0 = arith.cmpi eq, %arg1, %c0_i32 : i32
    %1 = arith.extui %0 : i1 to i32
    %c0_i32_0 = arith.constant 0 : i32
    %2 = arith.cmpi ne, %1, %c0_i32_0 : i32
    scf.if %2 {
      %cst_235 = arith.constant 0.000000e+00 : f32
      %303 = vector.broadcast %cst_235 : f32 to vector<1x22x8x128xf32>
      %c0_236 = arith.constant 0 : index
      %c0_237 = arith.constant 0 : index
      %c0_238 = arith.constant 0 : index
      %c0_239 = arith.constant 0 : index
      %304 = vector.load %arg4[%c0_236, %c0_237, %c0_238, %c0_239] : memref<1x22x8x128xf32, #tpu.memory_space<vmem>>, vector<1x22x8x128xf32>
      tpu.vector_store %arg4[%c0_236, %c0_237, %c0_238, %c0_239], %303 {strides = array<i32>} : memref<1x22x8x128xf32, #tpu.memory_space<vmem>>, vector<1x22x8x128xf32>,
    } else {
    }
    %cst = arith.constant 0.000000e+00 : f32
    %3 = vector.broadcast %cst : f32 to vector<8x128xf32>
    %c0_i32_1 = arith.constant 0 : i32
    %c128_i32 = arith.constant 128 : i32
    %4 = arith.muli %c0_i32_1, %c128_i32 : i32
    %5 = tpu.assume_multiple %4, 128 : i32
    %c0 = arith.constant 0 : index
    %c0_2 = arith.constant 0 : index
    %6 = arith.index_cast %5 : i32 to index
    %7 = vector.load %arg2[%c0, %c0_2, %6] : memref<5x8x128xf32, #tpu.memory_space<vmem>>, vector<5x8x128xf32>
    %c0_3 = arith.constant 0 : index
    %c0_4 = arith.constant 0 : index
    %8 = arith.index_cast %5 : i32 to index
    %9 = vector.load %arg3[%c0_3, %c0_4, %8] : memref<5x8x128xf32, #tpu.memory_space<vmem>>, vector<5x8x128xf32>
    %10 = vector.extract_strided_slice %7 {offsets = [0, 0, 0], sizes = [1, 8, 128], strides = [1, 1, 1]} : vector<5x8x128xf32> to vector<1x8x128xf32>
    %11 = vector.shape_cast %10 : vector<1x8x128xf32> to vector<8x128xf32>
    %12 = vector.extract_strided_slice %9 {offsets = [0, 0, 0], sizes = [1, 8, 128], strides = [1, 1, 1]} : vector<5x8x128xf32> to vector<1x8x128xf32>
    %13 = vector.shape_cast %12 : vector<1x8x128xf32> to vector<8x128xf32>
    %cst_5 = arith.constant 5.000000e-01 : f32
    %14 = vector.broadcast %cst_5 : f32 to vector<8x128xf32>
    %15 = arith.cmpf ogt, %13, %14 : vector<8x128xf32>
    %cst_6 = arith.constant 1.000000e+00 : f32
    %16 = vector.broadcast %cst_6 : f32 to vector<8x128xf32>
    %17 = arith.subf %16, %11 : vector<8x128xf32>
    %18 = arith.select %15, %11, %17 : vector<8x128xi1>, vector<8x128xf32>
    %cst_7 = arith.constant 2.500000e-01 : f32
    %cst_8 = arith.constant 7.500000e-01 : f32
    %19 = vector.broadcast %cst_7 : f32 to vector<8x128xf32>
    %20 = vector.broadcast %cst_8 : f32 to vector<8x128xf32>
    %21 = arith.select %15, %19, %20 : vector<8x128xi1>, vector<8x128xf32>
    %cst_9 = arith.constant 1.000000e+00 : f32
    %22 = vector.broadcast %cst_9 : f32 to vector<8x128xf32>
    %23 = arith.subf %22, %18 : vector<8x128xf32>
    %cst_10 = arith.constant 0.000000e+00 : f32
    %24 = vector.broadcast %cst_10 : f32 to vector<8x128xf32>
    %25 = arith.subf %24, %21 : vector<8x128xf32>
    %26 = arith.mulf %25, %23 : vector<8x128xf32>
    %27 = arith.mulf %26, %23 : vector<8x128xf32>
    %cst_11 = arith.constant 9.99999974E-6 : f32
    %28 = vector.broadcast %cst_11 : f32 to vector<8x128xf32>
    %29 = arith.addf %18, %28 : vector<8x128xf32>
    %30 = math.log %29 : vector<8x128xf32>
    %31 = arith.mulf %27, %30 : vector<8x128xf32>
    %cst_12 = arith.constant 1.000000e-01 : f32
    %32 = vector.broadcast %cst_12 : f32 to vector<8x128xf32>
    %33 = arith.cmpf ogt, %13, %32 : vector<8x128xf32>
    %34 = arith.addf %3, %31 : vector<8x128xf32>
    %cst_13 = arith.constant 1.000000e+00 : f32
    %cst_14 = arith.constant 0.000000e+00 : f32
    %35 = vector.broadcast %cst_13 : f32 to vector<8x128xf32>
    %36 = vector.broadcast %cst_14 : f32 to vector<8x128xf32>
    %37 = arith.select %33, %35, %36 : vector<8x128xi1>, vector<8x128xf32>
    %38 = arith.addf %3, %37 : vector<8x128xf32>
    %39 = vector.extract_strided_slice %7 {offsets = [1, 0, 0], sizes = [4, 8, 128], strides = [1, 1, 1]} : vector<5x8x128xf32> to vector<4x8x128xf32>
    %40 = vector.extract_strided_slice %9 {offsets = [1, 0, 0], sizes = [4, 8, 128], strides = [1, 1, 1]} : vector<5x8x128xf32> to vector<4x8x128xf32>
    %41 = arith.subf %39, %40 : vector<4x8x128xf32>
    %42 = arith.mulf %41, %41 : vector<4x8x128xf32>
    %cst_15 = arith.constant 4.000000e-04 : f32
    %43 = vector.broadcast %cst_15 : f32 to vector<4x8x128xf32>
    %44 = arith.addf %42, %43 : vector<4x8x128xf32>
    %45 = math.rsqrt %44 : vector<4x8x128xf32>
    %46 = math.absf %41 : vector<4x8x128xf32>
    %47 = arith.mulf %46, %45 : vector<4x8x128xf32>
    %48 = arith.mulf %44, %45 : vector<4x8x128xf32>
    %cst_16 = arith.constant 2.000000e-02 : f32
    %49 = vector.broadcast %cst_16 : f32 to vector<4x8x128xf32>
    %50 = arith.subf %48, %49 : vector<4x8x128xf32>
    %cst_17 = arith.constant 1.000000e+01 : f32
    %51 = vector.broadcast %cst_17 : f32 to vector<4x8x128xf32>
    %52 = arith.mulf %47, %51 : vector<4x8x128xf32>
    %53 = math.floor %52 : vector<4x8x128xf32>
    %cst_18 = arith.constant 9.000000e+00 : f32
    %54 = vector.broadcast %cst_18 : f32 to vector<4x8x128xf32>
    %55 = arith.minimumf %53, %54 : vector<4x8x128xf32>
    %56 = vector.shape_cast %33 : vector<8x128xi1> to vector<1x8x128xi1>
    %cst_19 = arith.constant -1.000000e+00 : f32
    %57 = vector.shape_cast %56 : vector<1x8x128xi1> to vector<1x8x128xi1>
    %58 = vector.broadcast %57 : vector<1x8x128xi1> to vector<4x8x128xi1>
    %59 = vector.broadcast %cst_19 : f32 to vector<4x8x128xf32>
    %60 = arith.select %58, %55, %59 : vector<4x8x128xi1>, vector<4x8x128xf32>
    %cst_20 = arith.constant 0.000000e+00 : f32
    %61 = vector.broadcast %cst_20 : f32 to vector<4x8x128xf32>
    %62 = arith.cmpf oeq, %60, %61 : vector<4x8x128xf32>
    %cst_21 = arith.constant 1.000000e+00 : f32
    %cst_22 = arith.constant 0.000000e+00 : f32
    %63 = vector.broadcast %cst_21 : f32 to vector<4x8x128xf32>
    %64 = vector.broadcast %cst_22 : f32 to vector<4x8x128xf32>
    %65 = arith.select %62, %63, %64 : vector<4x8x128xi1>, vector<4x8x128xf32>
    %cst_23 = arith.constant dense<0.000000e+00> : vector<8x128xf32>
    %66 = vector.multi_reduction <add>, %65, %cst_23 [0] : vector<4x8x128xf32> to vector<8x128xf32>
    %67 = arith.addf %3, %66 : vector<8x128xf32>
    %cst_24 = arith.constant 0.000000e+00 : f32
    %68 = vector.broadcast %cst_24 : f32 to vector<4x8x128xf32>
    %69 = arith.select %62, %50, %68 : vector<4x8x128xi1>, vector<4x8x128xf32>
    %cst_25 = arith.constant dense<0.000000e+00> : vector<8x128xf32>
    %70 = vector.multi_reduction <add>, %69, %cst_25 [0] : vector<4x8x128xf32> to vector<8x128xf32>
    %71 = arith.addf %3, %70 : vector<8x128xf32>
    %cst_26 = arith.constant 1.000000e+00 : f32
    %72 = vector.broadcast %cst_26 : f32 to vector<4x8x128xf32>
    %73 = arith.cmpf oeq, %60, %72 : vector<4x8x128xf32>
    %cst_27 = arith.constant 1.000000e+00 : f32
    %cst_28 = arith.constant 0.000000e+00 : f32
    %74 = vector.broadcast %cst_27 : f32 to vector<4x8x128xf32>
    %75 = vector.broadcast %cst_28 : f32 to vector<4x8x128xf32>
    %76 = arith.select %73, %74, %75 : vector<4x8x128xi1>, vector<4x8x128xf32>
    %cst_29 = arith.constant dense<0.000000e+00> : vector<8x128xf32>
    %77 = vector.multi_reduction <add>, %76, %cst_29 [0] : vector<4x8x128xf32> to vector<8x128xf32>
    %78 = arith.addf %3, %77 : vector<8x128xf32>
    %cst_30 = arith.constant 0.000000e+00 : f32
    %79 = vector.broadcast %cst_30 : f32 to vector<4x8x128xf32>
    %80 = arith.select %73, %50, %79 : vector<4x8x128xi1>, vector<4x8x128xf32>
    %cst_31 = arith.constant dense<0.000000e+00> : vector<8x128xf32>
    %81 = vector.multi_reduction <add>, %80, %cst_31 [0] : vector<4x8x128xf32> to vector<8x128xf32>
    %82 = arith.addf %3, %81 : vector<8x128xf32>
    %cst_32 = arith.constant 2.000000e+00 : f32
    %83 = vector.broadcast %cst_32 : f32 to vector<4x8x128xf32>
    %84 = arith.cmpf oeq, %60, %83 : vector<4x8x128xf32>
    %cst_33 = arith.constant 1.000000e+00 : f32
    %cst_34 = arith.constant 0.000000e+00 : f32
    %85 = vector.broadcast %cst_33 : f32 to vector<4x8x128xf32>
    %86 = vector.broadcast %cst_34 : f32 to vector<4x8x128xf32>
    %87 = arith.select %84, %85, %86 : vector<4x8x128xi1>, vector<4x8x128xf32>
    %cst_35 = arith.constant dense<0.000000e+00> : vector<8x128xf32>
    %88 = vector.multi_reduction <add>, %87, %cst_35 [0] : vector<4x8x128xf32> to vector<8x128xf32>
    %89 = arith.addf %3, %88 : vector<8x128xf32>
    %cst_36 = arith.constant 0.000000e+00 : f32
    %90 = vector.broadcast %cst_36 : f32 to vector<4x8x128xf32>
    %91 = arith.select %84, %50, %90 : vector<4x8x128xi1>, vector<4x8x128xf32>
    %cst_37 = arith.constant dense<0.000000e+00> : vector<8x128xf32>
    %92 = vector.multi_reduction <add>, %91, %cst_37 [0] : vector<4x8x128xf32> to vector<8x128xf32>
    %93 = arith.addf %3, %92 : vector<8x128xf32>
    %cst_38 = arith.constant 3.000000e+00 : f32
    %94 = vector.broadcast %cst_38 : f32 to vector<4x8x128xf32>
    %95 = arith.cmpf oeq, %60, %94 : vector<4x8x128xf32>
    %cst_39 = arith.constant 1.000000e+00 : f32
    %cst_40 = arith.constant 0.000000e+00 : f32
    %96 = vector.broadcast %cst_39 : f32 to vector<4x8x128xf32>
    %97 = vector.broadcast %cst_40 : f32 to vector<4x8x128xf32>
    %98 = arith.select %95, %96, %97 : vector<4x8x128xi1>, vector<4x8x128xf32>
    %cst_41 = arith.constant dense<0.000000e+00> : vector<8x128xf32>
    %99 = vector.multi_reduction <add>, %98, %cst_41 [0] : vector<4x8x128xf32> to vector<8x128xf32>
    %100 = arith.addf %3, %99 : vector<8x128xf32>
    %cst_42 = arith.constant 0.000000e+00 : f32
    %101 = vector.broadcast %cst_42 : f32 to vector<4x8x128xf32>
    %102 = arith.select %95, %50, %101 : vector<4x8x128xi1>, vector<4x8x128xf32>
    %cst_43 = arith.constant dense<0.000000e+00> : vector<8x128xf32>
    %103 = vector.multi_reduction <add>, %102, %cst_43 [0] : vector<4x8x128xf32> to vector<8x128xf32>
    %104 = arith.addf %3, %103 : vector<8x128xf32>
    %cst_44 = arith.constant 4.000000e+00 : f32
    %105 = vector.broadcast %cst_44 : f32 to vector<4x8x128xf32>
    %106 = arith.cmpf oeq, %60, %105 : vector<4x8x128xf32>
    %cst_45 = arith.constant 1.000000e+00 : f32
    %cst_46 = arith.constant 0.000000e+00 : f32
    %107 = vector.broadcast %cst_45 : f32 to vector<4x8x128xf32>
    %108 = vector.broadcast %cst_46 : f32 to vector<4x8x128xf32>
    %109 = arith.select %106, %107, %108 : vector<4x8x128xi1>, vector<4x8x128xf32>
    %cst_47 = arith.constant dense<0.000000e+00> : vector<8x128xf32>
    %110 = vector.multi_reduction <add>, %109, %cst_47 [0] : vector<4x8x128xf32> to vector<8x128xf32>
    %111 = arith.addf %3, %110 : vector<8x128xf32>
    %cst_48 = arith.constant 0.000000e+00 : f32
    %112 = vector.broadcast %cst_48 : f32 to vector<4x8x128xf32>
    %113 = arith.select %106, %50, %112 : vector<4x8x128xi1>, vector<4x8x128xf32>
    %cst_49 = arith.constant dense<0.000000e+00> : vector<8x128xf32>
    %114 = vector.multi_reduction <add>, %113, %cst_49 [0] : vector<4x8x128xf32> to vector<8x128xf32>
    %115 = arith.addf %3, %114 : vector<8x128xf32>
    %cst_50 = arith.constant 5.000000e+00 : f32
    %116 = vector.broadcast %cst_50 : f32 to vector<4x8x128xf32>
    %117 = arith.cmpf oeq, %60, %116 : vector<4x8x128xf32>
    %cst_51 = arith.constant 1.000000e+00 : f32
    %cst_52 = arith.constant 0.000000e+00 : f32
    %118 = vector.broadcast %cst_51 : f32 to vector<4x8x128xf32>
    %119 = vector.broadcast %cst_52 : f32 to vector<4x8x128xf32>
    %120 = arith.select %117, %118, %119 : vector<4x8x128xi1>, vector<4x8x128xf32>
    %cst_53 = arith.constant dense<0.000000e+00> : vector<8x128xf32>
    %121 = vector.multi_reduction <add>, %120, %cst_53 [0] : vector<4x8x128xf32> to vector<8x128xf32>
    %122 = arith.addf %3, %121 : vector<8x128xf32>
    %cst_54 = arith.constant 0.000000e+00 : f32
    %123 = vector.broadcast %cst_54 : f32 to vector<4x8x128xf32>
    %124 = arith.select %117, %50, %123 : vector<4x8x128xi1>, vector<4x8x128xf32>
    %cst_55 = arith.constant dense<0.000000e+00> : vector<8x128xf32>
    %125 = vector.multi_reduction <add>, %124, %cst_55 [0] : vector<4x8x128xf32> to vector<8x128xf32>
    %126 = arith.addf %3, %125 : vector<8x128xf32>
    %cst_56 = arith.constant 6.000000e+00 : f32
    %127 = vector.broadcast %cst_56 : f32 to vector<4x8x128xf32>
    %128 = arith.cmpf oeq, %60, %127 : vector<4x8x128xf32>
    %cst_57 = arith.constant 1.000000e+00 : f32
    %cst_58 = arith.constant 0.000000e+00 : f32
    %129 = vector.broadcast %cst_57 : f32 to vector<4x8x128xf32>
    %130 = vector.broadcast %cst_58 : f32 to vector<4x8x128xf32>
    %131 = arith.select %128, %129, %130 : vector<4x8x128xi1>, vector<4x8x128xf32>
    %cst_59 = arith.constant dense<0.000000e+00> : vector<8x128xf32>
    %132 = vector.multi_reduction <add>, %131, %cst_59 [0] : vector<4x8x128xf32> to vector<8x128xf32>
    %133 = arith.addf %3, %132 : vector<8x128xf32>
    %cst_60 = arith.constant 0.000000e+00 : f32
    %134 = vector.broadcast %cst_60 : f32 to vector<4x8x128xf32>
    %135 = arith.select %128, %50, %134 : vector<4x8x128xi1>, vector<4x8x128xf32>
    %cst_61 = arith.constant dense<0.000000e+00> : vector<8x128xf32>
    %136 = vector.multi_reduction <add>, %135, %cst_61 [0] : vector<4x8x128xf32> to vector<8x128xf32>
    %137 = arith.addf %3, %136 : vector<8x128xf32>
    %cst_62 = arith.constant 7.000000e+00 : f32
    %138 = vector.broadcast %cst_62 : f32 to vector<4x8x128xf32>
    %139 = arith.cmpf oeq, %60, %138 : vector<4x8x128xf32>
    %cst_63 = arith.constant 1.000000e+00 : f32
    %cst_64 = arith.constant 0.000000e+00 : f32
    %140 = vector.broadcast %cst_63 : f32 to vector<4x8x128xf32>
    %141 = vector.broadcast %cst_64 : f32 to vector<4x8x128xf32>
    %142 = arith.select %139, %140, %141 : vector<4x8x128xi1>, vector<4x8x128xf32>
    %cst_65 = arith.constant dense<0.000000e+00> : vector<8x128xf32>
    %143 = vector.multi_reduction <add>, %142, %cst_65 [0] : vector<4x8x128xf32> to vector<8x128xf32>
    %144 = arith.addf %3, %143 : vector<8x128xf32>
    %cst_66 = arith.constant 0.000000e+00 : f32
    %145 = vector.broadcast %cst_66 : f32 to vector<4x8x128xf32>
    %146 = arith.select %139, %50, %145 : vector<4x8x128xi1>, vector<4x8x128xf32>
    %cst_67 = arith.constant dense<0.000000e+00> : vector<8x128xf32>
    %147 = vector.multi_reduction <add>, %146, %cst_67 [0] : vector<4x8x128xf32> to vector<8x128xf32>
    %148 = arith.addf %3, %147 : vector<8x128xf32>
    %cst_68 = arith.constant 8.000000e+00 : f32
    %149 = vector.broadcast %cst_68 : f32 to vector<4x8x128xf32>
    %150 = arith.cmpf oeq, %60, %149 : vector<4x8x128xf32>
    %cst_69 = arith.constant 1.000000e+00 : f32
    %cst_70 = arith.constant 0.000000e+00 : f32
    %151 = vector.broadcast %cst_69 : f32 to vector<4x8x128xf32>
    %152 = vector.broadcast %cst_70 : f32 to vector<4x8x128xf32>
    %153 = arith.select %150, %151, %152 : vector<4x8x128xi1>, vector<4x8x128xf32>
    %cst_71 = arith.constant dense<0.000000e+00> : vector<8x128xf32>
    %154 = vector.multi_reduction <add>, %153, %cst_71 [0] : vector<4x8x128xf32> to vector<8x128xf32>
    %155 = arith.addf %3, %154 : vector<8x128xf32>
    %cst_72 = arith.constant 0.000000e+00 : f32
    %156 = vector.broadcast %cst_72 : f32 to vector<4x8x128xf32>
    %157 = arith.select %150, %50, %156 : vector<4x8x128xi1>, vector<4x8x128xf32>
    %cst_73 = arith.constant dense<0.000000e+00> : vector<8x128xf32>
    %158 = vector.multi_reduction <add>, %157, %cst_73 [0] : vector<4x8x128xf32> to vector<8x128xf32>
    %159 = arith.addf %3, %158 : vector<8x128xf32>
    %cst_74 = arith.constant 9.000000e+00 : f32
    %160 = vector.broadcast %cst_74 : f32 to vector<4x8x128xf32>
    %161 = arith.cmpf oeq, %60, %160 : vector<4x8x128xf32>
    %cst_75 = arith.constant 1.000000e+00 : f32
    %cst_76 = arith.constant 0.000000e+00 : f32
    %162 = vector.broadcast %cst_75 : f32 to vector<4x8x128xf32>
    %163 = vector.broadcast %cst_76 : f32 to vector<4x8x128xf32>
    %164 = arith.select %161, %162, %163 : vector<4x8x128xi1>, vector<4x8x128xf32>
    %cst_77 = arith.constant dense<0.000000e+00> : vector<8x128xf32>
    %165 = vector.multi_reduction <add>, %164, %cst_77 [0] : vector<4x8x128xf32> to vector<8x128xf32>
    %166 = arith.addf %3, %165 : vector<8x128xf32>
    %cst_78 = arith.constant 0.000000e+00 : f32
    %167 = vector.broadcast %cst_78 : f32 to vector<4x8x128xf32>
    %168 = arith.select %161, %50, %167 : vector<4x8x128xi1>, vector<4x8x128xf32>
    %cst_79 = arith.constant dense<0.000000e+00> : vector<8x128xf32>
    %169 = vector.multi_reduction <add>, %168, %cst_79 [0] : vector<4x8x128xf32> to vector<8x128xf32>
    %170 = arith.addf %3, %169 : vector<8x128xf32>
    %c1_i32 = arith.constant 1 : i32
    %c0_80 = arith.constant 0 : index
    %c0_81 = arith.constant 0 : index
    %c0_82 = arith.constant 0 : index
    %c0_83 = arith.constant 0 : index
    %171 = vector.load %arg4[%c0_80, %c0_81, %c0_82, %c0_83] : memref<1x22x8x128xf32, #tpu.memory_space<vmem>>, vector<1x1x8x128xf32>
    %172 = vector.shape_cast %171 : vector<1x1x8x128xf32> to vector<8x128xf32>
    %173 = arith.addf %172, %34 : vector<8x128xf32>
    %c0_84 = arith.constant 0 : index
    %c0_85 = arith.constant 0 : index
    %c0_86 = arith.constant 0 : index
    %c0_87 = arith.constant 0 : index
    %174 = vector.load %arg4[%c0_84, %c0_85, %c0_86, %c0_87] : memref<1x22x8x128xf32, #tpu.memory_space<vmem>>, vector<1x1x8x128xf32>
    %175 = vector.shape_cast %174 : vector<1x1x8x128xf32> to vector<8x128xf32>
    %176 = vector.shape_cast %173 : vector<8x128xf32> to vector<1x1x8x128xf32>
    tpu.vector_store %arg4[%c0_84, %c0_85, %c0_86, %c0_87], %176 {strides = array<i32>} : memref<1x22x8x128xf32, #tpu.memory_space<vmem>>, vector<1x1x8x128xf32>,
    %c0_88 = arith.constant 0 : index
    %c1 = arith.constant 1 : index
    %c0_89 = arith.constant 0 : index
    %c0_90 = arith.constant 0 : index
    %177 = vector.load %arg4[%c0_88, %c1, %c0_89, %c0_90] : memref<1x22x8x128xf32, #tpu.memory_space<vmem>>, vector<1x1x8x128xf32>
    %178 = vector.shape_cast %177 : vector<1x1x8x128xf32> to vector<8x128xf32>
    %179 = arith.addf %178, %38 : vector<8x128xf32>
    %c0_91 = arith.constant 0 : index
    %c1_92 = arith.constant 1 : index
    %c0_93 = arith.constant 0 : index
    %c0_94 = arith.constant 0 : index
    %180 = vector.load %arg4[%c0_91, %c1_92, %c0_93, %c0_94] : memref<1x22x8x128xf32, #tpu.memory_space<vmem>>, vector<1x1x8x128xf32>
    %181 = vector.shape_cast %180 : vector<1x1x8x128xf32> to vector<8x128xf32>
    %182 = vector.shape_cast %179 : vector<8x128xf32> to vector<1x1x8x128xf32>
    tpu.vector_store %arg4[%c0_91, %c1_92, %c0_93, %c0_94], %182 {strides = array<i32>} : memref<1x22x8x128xf32, #tpu.memory_space<vmem>>, vector<1x1x8x128xf32>,
    %c0_95 = arith.constant 0 : index
    %c2 = arith.constant 2 : index
    %c0_96 = arith.constant 0 : index
    %c0_97 = arith.constant 0 : index
    %183 = vector.load %arg4[%c0_95, %c2, %c0_96, %c0_97] : memref<1x22x8x128xf32, #tpu.memory_space<vmem>>, vector<1x1x8x128xf32>
    %184 = vector.shape_cast %183 : vector<1x1x8x128xf32> to vector<8x128xf32>
    %185 = arith.addf %184, %67 : vector<8x128xf32>
    %c0_98 = arith.constant 0 : index
    %c2_99 = arith.constant 2 : index
    %c0_100 = arith.constant 0 : index
    %c0_101 = arith.constant 0 : index
    %186 = vector.load %arg4[%c0_98, %c2_99, %c0_100, %c0_101] : memref<1x22x8x128xf32, #tpu.memory_space<vmem>>, vector<1x1x8x128xf32>
    %187 = vector.shape_cast %186 : vector<1x1x8x128xf32> to vector<8x128xf32>
    %188 = vector.shape_cast %185 : vector<8x128xf32> to vector<1x1x8x128xf32>
    tpu.vector_store %arg4[%c0_98, %c2_99, %c0_100, %c0_101], %188 {strides = array<i32>} : memref<1x22x8x128xf32, #tpu.memory_space<vmem>>, vector<1x1x8x128xf32>,
    %c0_102 = arith.constant 0 : index
    %c12 = arith.constant 12 : index
    %c0_103 = arith.constant 0 : index
    %c0_104 = arith.constant 0 : index
    %189 = vector.load %arg4[%c0_102, %c12, %c0_103, %c0_104] : memref<1x22x8x128xf32, #tpu.memory_space<vmem>>, vector<1x1x8x128xf32>
    %190 = vector.shape_cast %189 : vector<1x1x8x128xf32> to vector<8x128xf32>
    %191 = arith.addf %190, %71 : vector<8x128xf32>
    %c0_105 = arith.constant 0 : index
    %c12_106 = arith.constant 12 : index
    %c0_107 = arith.constant 0 : index
    %c0_108 = arith.constant 0 : index
    %192 = vector.load %arg4[%c0_105, %c12_106, %c0_107, %c0_108] : memref<1x22x8x128xf32, #tpu.memory_space<vmem>>, vector<1x1x8x128xf32>
    %193 = vector.shape_cast %192 : vector<1x1x8x128xf32> to vector<8x128xf32>
    %194 = vector.shape_cast %191 : vector<8x128xf32> to vector<1x1x8x128xf32>
    tpu.vector_store %arg4[%c0_105, %c12_106, %c0_107, %c0_108], %194 {strides = array<i32>} : memref<1x22x8x128xf32, #tpu.memory_space<vmem>>, vector<1x1x8x128xf32>,
    %c0_109 = arith.constant 0 : index
    %c3 = arith.constant 3 : index
    %c0_110 = arith.constant 0 : index
    %c0_111 = arith.constant 0 : index
    %195 = vector.load %arg4[%c0_109, %c3, %c0_110, %c0_111] : memref<1x22x8x128xf32, #tpu.memory_space<vmem>>, vector<1x1x8x128xf32>
    %196 = vector.shape_cast %195 : vector<1x1x8x128xf32> to vector<8x128xf32>
    %197 = arith.addf %196, %78 : vector<8x128xf32>
    %c0_112 = arith.constant 0 : index
    %c3_113 = arith.constant 3 : index
    %c0_114 = arith.constant 0 : index
    %c0_115 = arith.constant 0 : index
    %198 = vector.load %arg4[%c0_112, %c3_113, %c0_114, %c0_115] : memref<1x22x8x128xf32, #tpu.memory_space<vmem>>, vector<1x1x8x128xf32>
    %199 = vector.shape_cast %198 : vector<1x1x8x128xf32> to vector<8x128xf32>
    %200 = vector.shape_cast %197 : vector<8x128xf32> to vector<1x1x8x128xf32>
    tpu.vector_store %arg4[%c0_112, %c3_113, %c0_114, %c0_115], %200 {strides = array<i32>} : memref<1x22x8x128xf32, #tpu.memory_space<vmem>>, vector<1x1x8x128xf32>,
    %c0_116 = arith.constant 0 : index
    %c13 = arith.constant 13 : index
    %c0_117 = arith.constant 0 : index
    %c0_118 = arith.constant 0 : index
    %201 = vector.load %arg4[%c0_116, %c13, %c0_117, %c0_118] : memref<1x22x8x128xf32, #tpu.memory_space<vmem>>, vector<1x1x8x128xf32>
    %202 = vector.shape_cast %201 : vector<1x1x8x128xf32> to vector<8x128xf32>
    %203 = arith.addf %202, %82 : vector<8x128xf32>
    %c0_119 = arith.constant 0 : index
    %c13_120 = arith.constant 13 : index
    %c0_121 = arith.constant 0 : index
    %c0_122 = arith.constant 0 : index
    %204 = vector.load %arg4[%c0_119, %c13_120, %c0_121, %c0_122] : memref<1x22x8x128xf32, #tpu.memory_space<vmem>>, vector<1x1x8x128xf32>
    %205 = vector.shape_cast %204 : vector<1x1x8x128xf32> to vector<8x128xf32>
    %206 = vector.shape_cast %203 : vector<8x128xf32> to vector<1x1x8x128xf32>
    tpu.vector_store %arg4[%c0_119, %c13_120, %c0_121, %c0_122], %206 {strides = array<i32>} : memref<1x22x8x128xf32, #tpu.memory_space<vmem>>, vector<1x1x8x128xf32>,
    %c0_123 = arith.constant 0 : index
    %c4 = arith.constant 4 : index
    %c0_124 = arith.constant 0 : index
    %c0_125 = arith.constant 0 : index
    %207 = vector.load %arg4[%c0_123, %c4, %c0_124, %c0_125] : memref<1x22x8x128xf32, #tpu.memory_space<vmem>>, vector<1x1x8x128xf32>
    %208 = vector.shape_cast %207 : vector<1x1x8x128xf32> to vector<8x128xf32>
    %209 = arith.addf %208, %89 : vector<8x128xf32>
    %c0_126 = arith.constant 0 : index
    %c4_127 = arith.constant 4 : index
    %c0_128 = arith.constant 0 : index
    %c0_129 = arith.constant 0 : index
    %210 = vector.load %arg4[%c0_126, %c4_127, %c0_128, %c0_129] : memref<1x22x8x128xf32, #tpu.memory_space<vmem>>, vector<1x1x8x128xf32>
    %211 = vector.shape_cast %210 : vector<1x1x8x128xf32> to vector<8x128xf32>
    %212 = vector.shape_cast %209 : vector<8x128xf32> to vector<1x1x8x128xf32>
    tpu.vector_store %arg4[%c0_126, %c4_127, %c0_128, %c0_129], %212 {strides = array<i32>} : memref<1x22x8x128xf32, #tpu.memory_space<vmem>>, vector<1x1x8x128xf32>,
    %c0_130 = arith.constant 0 : index
    %c14 = arith.constant 14 : index
    %c0_131 = arith.constant 0 : index
    %c0_132 = arith.constant 0 : index
    %213 = vector.load %arg4[%c0_130, %c14, %c0_131, %c0_132] : memref<1x22x8x128xf32, #tpu.memory_space<vmem>>, vector<1x1x8x128xf32>
    %214 = vector.shape_cast %213 : vector<1x1x8x128xf32> to vector<8x128xf32>
    %215 = arith.addf %214, %93 : vector<8x128xf32>
    %c0_133 = arith.constant 0 : index
    %c14_134 = arith.constant 14 : index
    %c0_135 = arith.constant 0 : index
    %c0_136 = arith.constant 0 : index
    %216 = vector.load %arg4[%c0_133, %c14_134, %c0_135, %c0_136] : memref<1x22x8x128xf32, #tpu.memory_space<vmem>>, vector<1x1x8x128xf32>
    %217 = vector.shape_cast %216 : vector<1x1x8x128xf32> to vector<8x128xf32>
    %218 = vector.shape_cast %215 : vector<8x128xf32> to vector<1x1x8x128xf32>
    tpu.vector_store %arg4[%c0_133, %c14_134, %c0_135, %c0_136], %218 {strides = array<i32>} : memref<1x22x8x128xf32, #tpu.memory_space<vmem>>, vector<1x1x8x128xf32>,
    %c0_137 = arith.constant 0 : index
    %c5 = arith.constant 5 : index
    %c0_138 = arith.constant 0 : index
    %c0_139 = arith.constant 0 : index
    %219 = vector.load %arg4[%c0_137, %c5, %c0_138, %c0_139] : memref<1x22x8x128xf32, #tpu.memory_space<vmem>>, vector<1x1x8x128xf32>
    %220 = vector.shape_cast %219 : vector<1x1x8x128xf32> to vector<8x128xf32>
    %221 = arith.addf %220, %100 : vector<8x128xf32>
    %c0_140 = arith.constant 0 : index
    %c5_141 = arith.constant 5 : index
    %c0_142 = arith.constant 0 : index
    %c0_143 = arith.constant 0 : index
    %222 = vector.load %arg4[%c0_140, %c5_141, %c0_142, %c0_143] : memref<1x22x8x128xf32, #tpu.memory_space<vmem>>, vector<1x1x8x128xf32>
    %223 = vector.shape_cast %222 : vector<1x1x8x128xf32> to vector<8x128xf32>
    %224 = vector.shape_cast %221 : vector<8x128xf32> to vector<1x1x8x128xf32>
    tpu.vector_store %arg4[%c0_140, %c5_141, %c0_142, %c0_143], %224 {strides = array<i32>} : memref<1x22x8x128xf32, #tpu.memory_space<vmem>>, vector<1x1x8x128xf32>,
    %c0_144 = arith.constant 0 : index
    %c15 = arith.constant 15 : index
    %c0_145 = arith.constant 0 : index
    %c0_146 = arith.constant 0 : index
    %225 = vector.load %arg4[%c0_144, %c15, %c0_145, %c0_146] : memref<1x22x8x128xf32, #tpu.memory_space<vmem>>, vector<1x1x8x128xf32>
    %226 = vector.shape_cast %225 : vector<1x1x8x128xf32> to vector<8x128xf32>
    %227 = arith.addf %226, %104 : vector<8x128xf32>
    %c0_147 = arith.constant 0 : index
    %c15_148 = arith.constant 15 : index
    %c0_149 = arith.constant 0 : index
    %c0_150 = arith.constant 0 : index
    %228 = vector.load %arg4[%c0_147, %c15_148, %c0_149, %c0_150] : memref<1x22x8x128xf32, #tpu.memory_space<vmem>>, vector<1x1x8x128xf32>
    %229 = vector.shape_cast %228 : vector<1x1x8x128xf32> to vector<8x128xf32>
    %230 = vector.shape_cast %227 : vector<8x128xf32> to vector<1x1x8x128xf32>
    tpu.vector_store %arg4[%c0_147, %c15_148, %c0_149, %c0_150], %230 {strides = array<i32>} : memref<1x22x8x128xf32, #tpu.memory_space<vmem>>, vector<1x1x8x128xf32>,
    %c0_151 = arith.constant 0 : index
    %c6 = arith.constant 6 : index
    %c0_152 = arith.constant 0 : index
    %c0_153 = arith.constant 0 : index
    %231 = vector.load %arg4[%c0_151, %c6, %c0_152, %c0_153] : memref<1x22x8x128xf32, #tpu.memory_space<vmem>>, vector<1x1x8x128xf32>
    %232 = vector.shape_cast %231 : vector<1x1x8x128xf32> to vector<8x128xf32>
    %233 = arith.addf %232, %111 : vector<8x128xf32>
    %c0_154 = arith.constant 0 : index
    %c6_155 = arith.constant 6 : index
    %c0_156 = arith.constant 0 : index
    %c0_157 = arith.constant 0 : index
    %234 = vector.load %arg4[%c0_154, %c6_155, %c0_156, %c0_157] : memref<1x22x8x128xf32, #tpu.memory_space<vmem>>, vector<1x1x8x128xf32>
    %235 = vector.shape_cast %234 : vector<1x1x8x128xf32> to vector<8x128xf32>
    %236 = vector.shape_cast %233 : vector<8x128xf32> to vector<1x1x8x128xf32>
    tpu.vector_store %arg4[%c0_154, %c6_155, %c0_156, %c0_157], %236 {strides = array<i32>} : memref<1x22x8x128xf32, #tpu.memory_space<vmem>>, vector<1x1x8x128xf32>,
    %c0_158 = arith.constant 0 : index
    %c16 = arith.constant 16 : index
    %c0_159 = arith.constant 0 : index
    %c0_160 = arith.constant 0 : index
    %237 = vector.load %arg4[%c0_158, %c16, %c0_159, %c0_160] : memref<1x22x8x128xf32, #tpu.memory_space<vmem>>, vector<1x1x8x128xf32>
    %238 = vector.shape_cast %237 : vector<1x1x8x128xf32> to vector<8x128xf32>
    %239 = arith.addf %238, %115 : vector<8x128xf32>
    %c0_161 = arith.constant 0 : index
    %c16_162 = arith.constant 16 : index
    %c0_163 = arith.constant 0 : index
    %c0_164 = arith.constant 0 : index
    %240 = vector.load %arg4[%c0_161, %c16_162, %c0_163, %c0_164] : memref<1x22x8x128xf32, #tpu.memory_space<vmem>>, vector<1x1x8x128xf32>
    %241 = vector.shape_cast %240 : vector<1x1x8x128xf32> to vector<8x128xf32>
    %242 = vector.shape_cast %239 : vector<8x128xf32> to vector<1x1x8x128xf32>
    tpu.vector_store %arg4[%c0_161, %c16_162, %c0_163, %c0_164], %242 {strides = array<i32>} : memref<1x22x8x128xf32, #tpu.memory_space<vmem>>, vector<1x1x8x128xf32>,
    %c0_165 = arith.constant 0 : index
    %c7 = arith.constant 7 : index
    %c0_166 = arith.constant 0 : index
    %c0_167 = arith.constant 0 : index
    %243 = vector.load %arg4[%c0_165, %c7, %c0_166, %c0_167] : memref<1x22x8x128xf32, #tpu.memory_space<vmem>>, vector<1x1x8x128xf32>
    %244 = vector.shape_cast %243 : vector<1x1x8x128xf32> to vector<8x128xf32>
    %245 = arith.addf %244, %122 : vector<8x128xf32>
    %c0_168 = arith.constant 0 : index
    %c7_169 = arith.constant 7 : index
    %c0_170 = arith.constant 0 : index
    %c0_171 = arith.constant 0 : index
    %246 = vector.load %arg4[%c0_168, %c7_169, %c0_170, %c0_171] : memref<1x22x8x128xf32, #tpu.memory_space<vmem>>, vector<1x1x8x128xf32>
    %247 = vector.shape_cast %246 : vector<1x1x8x128xf32> to vector<8x128xf32>
    %248 = vector.shape_cast %245 : vector<8x128xf32> to vector<1x1x8x128xf32>
    tpu.vector_store %arg4[%c0_168, %c7_169, %c0_170, %c0_171], %248 {strides = array<i32>} : memref<1x22x8x128xf32, #tpu.memory_space<vmem>>, vector<1x1x8x128xf32>,
    %c0_172 = arith.constant 0 : index
    %c17 = arith.constant 17 : index
    %c0_173 = arith.constant 0 : index
    %c0_174 = arith.constant 0 : index
    %249 = vector.load %arg4[%c0_172, %c17, %c0_173, %c0_174] : memref<1x22x8x128xf32, #tpu.memory_space<vmem>>, vector<1x1x8x128xf32>
    %250 = vector.shape_cast %249 : vector<1x1x8x128xf32> to vector<8x128xf32>
    %251 = arith.addf %250, %126 : vector<8x128xf32>
    %c0_175 = arith.constant 0 : index
    %c17_176 = arith.constant 17 : index
    %c0_177 = arith.constant 0 : index
    %c0_178 = arith.constant 0 : index
    %252 = vector.load %arg4[%c0_175, %c17_176, %c0_177, %c0_178] : memref<1x22x8x128xf32, #tpu.memory_space<vmem>>, vector<1x1x8x128xf32>
    %253 = vector.shape_cast %252 : vector<1x1x8x128xf32> to vector<8x128xf32>
    %254 = vector.shape_cast %251 : vector<8x128xf32> to vector<1x1x8x128xf32>
    tpu.vector_store %arg4[%c0_175, %c17_176, %c0_177, %c0_178], %254 {strides = array<i32>} : memref<1x22x8x128xf32, #tpu.memory_space<vmem>>, vector<1x1x8x128xf32>,
    %c0_179 = arith.constant 0 : index
    %c8 = arith.constant 8 : index
    %c0_180 = arith.constant 0 : index
    %c0_181 = arith.constant 0 : index
    %255 = vector.load %arg4[%c0_179, %c8, %c0_180, %c0_181] : memref<1x22x8x128xf32, #tpu.memory_space<vmem>>, vector<1x1x8x128xf32>
    %256 = vector.shape_cast %255 : vector<1x1x8x128xf32> to vector<8x128xf32>
    %257 = arith.addf %256, %133 : vector<8x128xf32>
    %c0_182 = arith.constant 0 : index
    %c8_183 = arith.constant 8 : index
    %c0_184 = arith.constant 0 : index
    %c0_185 = arith.constant 0 : index
    %258 = vector.load %arg4[%c0_182, %c8_183, %c0_184, %c0_185] : memref<1x22x8x128xf32, #tpu.memory_space<vmem>>, vector<1x1x8x128xf32>
    %259 = vector.shape_cast %258 : vector<1x1x8x128xf32> to vector<8x128xf32>
    %260 = vector.shape_cast %257 : vector<8x128xf32> to vector<1x1x8x128xf32>
    tpu.vector_store %arg4[%c0_182, %c8_183, %c0_184, %c0_185], %260 {strides = array<i32>} : memref<1x22x8x128xf32, #tpu.memory_space<vmem>>, vector<1x1x8x128xf32>,
    %c0_186 = arith.constant 0 : index
    %c18 = arith.constant 18 : index
    %c0_187 = arith.constant 0 : index
    %c0_188 = arith.constant 0 : index
    %261 = vector.load %arg4[%c0_186, %c18, %c0_187, %c0_188] : memref<1x22x8x128xf32, #tpu.memory_space<vmem>>, vector<1x1x8x128xf32>
    %262 = vector.shape_cast %261 : vector<1x1x8x128xf32> to vector<8x128xf32>
    %263 = arith.addf %262, %137 : vector<8x128xf32>
    %c0_189 = arith.constant 0 : index
    %c18_190 = arith.constant 18 : index
    %c0_191 = arith.constant 0 : index
    %c0_192 = arith.constant 0 : index
    %264 = vector.load %arg4[%c0_189, %c18_190, %c0_191, %c0_192] : memref<1x22x8x128xf32, #tpu.memory_space<vmem>>, vector<1x1x8x128xf32>
    %265 = vector.shape_cast %264 : vector<1x1x8x128xf32> to vector<8x128xf32>
    %266 = vector.shape_cast %263 : vector<8x128xf32> to vector<1x1x8x128xf32>
    tpu.vector_store %arg4[%c0_189, %c18_190, %c0_191, %c0_192], %266 {strides = array<i32>} : memref<1x22x8x128xf32, #tpu.memory_space<vmem>>, vector<1x1x8x128xf32>,
    %c0_193 = arith.constant 0 : index
    %c9 = arith.constant 9 : index
    %c0_194 = arith.constant 0 : index
    %c0_195 = arith.constant 0 : index
    %267 = vector.load %arg4[%c0_193, %c9, %c0_194, %c0_195] : memref<1x22x8x128xf32, #tpu.memory_space<vmem>>, vector<1x1x8x128xf32>
    %268 = vector.shape_cast %267 : vector<1x1x8x128xf32> to vector<8x128xf32>
    %269 = arith.addf %268, %144 : vector<8x128xf32>
    %c0_196 = arith.constant 0 : index
    %c9_197 = arith.constant 9 : index
    %c0_198 = arith.constant 0 : index
    %c0_199 = arith.constant 0 : index
    %270 = vector.load %arg4[%c0_196, %c9_197, %c0_198, %c0_199] : memref<1x22x8x128xf32, #tpu.memory_space<vmem>>, vector<1x1x8x128xf32>
    %271 = vector.shape_cast %270 : vector<1x1x8x128xf32> to vector<8x128xf32>
    %272 = vector.shape_cast %269 : vector<8x128xf32> to vector<1x1x8x128xf32>
    tpu.vector_store %arg4[%c0_196, %c9_197, %c0_198, %c0_199], %272 {strides = array<i32>} : memref<1x22x8x128xf32, #tpu.memory_space<vmem>>, vector<1x1x8x128xf32>,
    %c0_200 = arith.constant 0 : index
    %c19 = arith.constant 19 : index
    %c0_201 = arith.constant 0 : index
    %c0_202 = arith.constant 0 : index
    %273 = vector.load %arg4[%c0_200, %c19, %c0_201, %c0_202] : memref<1x22x8x128xf32, #tpu.memory_space<vmem>>, vector<1x1x8x128xf32>
    %274 = vector.shape_cast %273 : vector<1x1x8x128xf32> to vector<8x128xf32>
    %275 = arith.addf %274, %148 : vector<8x128xf32>
    %c0_203 = arith.constant 0 : index
    %c19_204 = arith.constant 19 : index
    %c0_205 = arith.constant 0 : index
    %c0_206 = arith.constant 0 : index
    %276 = vector.load %arg4[%c0_203, %c19_204, %c0_205, %c0_206] : memref<1x22x8x128xf32, #tpu.memory_space<vmem>>, vector<1x1x8x128xf32>
    %277 = vector.shape_cast %276 : vector<1x1x8x128xf32> to vector<8x128xf32>
    %278 = vector.shape_cast %275 : vector<8x128xf32> to vector<1x1x8x128xf32>
    tpu.vector_store %arg4[%c0_203, %c19_204, %c0_205, %c0_206], %278 {strides = array<i32>} : memref<1x22x8x128xf32, #tpu.memory_space<vmem>>, vector<1x1x8x128xf32>,
    %c0_207 = arith.constant 0 : index
    %c10 = arith.constant 10 : index
    %c0_208 = arith.constant 0 : index
    %c0_209 = arith.constant 0 : index
    %279 = vector.load %arg4[%c0_207, %c10, %c0_208, %c0_209] : memref<1x22x8x128xf32, #tpu.memory_space<vmem>>, vector<1x1x8x128xf32>
    %280 = vector.shape_cast %279 : vector<1x1x8x128xf32> to vector<8x128xf32>
    %281 = arith.addf %280, %155 : vector<8x128xf32>
    %c0_210 = arith.constant 0 : index
    %c10_211 = arith.constant 10 : index
    %c0_212 = arith.constant 0 : index
    %c0_213 = arith.constant 0 : index
    %282 = vector.load %arg4[%c0_210, %c10_211, %c0_212, %c0_213] : memref<1x22x8x128xf32, #tpu.memory_space<vmem>>, vector<1x1x8x128xf32>
    %283 = vector.shape_cast %282 : vector<1x1x8x128xf32> to vector<8x128xf32>
    %284 = vector.shape_cast %281 : vector<8x128xf32> to vector<1x1x8x128xf32>
    tpu.vector_store %arg4[%c0_210, %c10_211, %c0_212, %c0_213], %284 {strides = array<i32>} : memref<1x22x8x128xf32, #tpu.memory_space<vmem>>, vector<1x1x8x128xf32>,
    %c0_214 = arith.constant 0 : index
    %c20 = arith.constant 20 : index
    %c0_215 = arith.constant 0 : index
    %c0_216 = arith.constant 0 : index
    %285 = vector.load %arg4[%c0_214, %c20, %c0_215, %c0_216] : memref<1x22x8x128xf32, #tpu.memory_space<vmem>>, vector<1x1x8x128xf32>
    %286 = vector.shape_cast %285 : vector<1x1x8x128xf32> to vector<8x128xf32>
    %287 = arith.addf %286, %159 : vector<8x128xf32>
    %c0_217 = arith.constant 0 : index
    %c20_218 = arith.constant 20 : index
    %c0_219 = arith.constant 0 : index
    %c0_220 = arith.constant 0 : index
    %288 = vector.load %arg4[%c0_217, %c20_218, %c0_219, %c0_220] : memref<1x22x8x128xf32, #tpu.memory_space<vmem>>, vector<1x1x8x128xf32>
    %289 = vector.shape_cast %288 : vector<1x1x8x128xf32> to vector<8x128xf32>
    %290 = vector.shape_cast %287 : vector<8x128xf32> to vector<1x1x8x128xf32>
    tpu.vector_store %arg4[%c0_217, %c20_218, %c0_219, %c0_220], %290 {strides = array<i32>} : memref<1x22x8x128xf32, #tpu.memory_space<vmem>>, vector<1x1x8x128xf32>,
    %c0_221 = arith.constant 0 : index
    %c11 = arith.constant 11 : index
    %c0_222 = arith.constant 0 : index
    %c0_223 = arith.constant 0 : index
    %291 = vector.load %arg4[%c0_221, %c11, %c0_222, %c0_223] : memref<1x22x8x128xf32, #tpu.memory_space<vmem>>, vector<1x1x8x128xf32>
    %292 = vector.shape_cast %291 : vector<1x1x8x128xf32> to vector<8x128xf32>
    %293 = arith.addf %292, %166 : vector<8x128xf32>
    %c0_224 = arith.constant 0 : index
    %c11_225 = arith.constant 11 : index
    %c0_226 = arith.constant 0 : index
    %c0_227 = arith.constant 0 : index
    %294 = vector.load %arg4[%c0_224, %c11_225, %c0_226, %c0_227] : memref<1x22x8x128xf32, #tpu.memory_space<vmem>>, vector<1x1x8x128xf32>
    %295 = vector.shape_cast %294 : vector<1x1x8x128xf32> to vector<8x128xf32>
    %296 = vector.shape_cast %293 : vector<8x128xf32> to vector<1x1x8x128xf32>
    tpu.vector_store %arg4[%c0_224, %c11_225, %c0_226, %c0_227], %296 {strides = array<i32>} : memref<1x22x8x128xf32, #tpu.memory_space<vmem>>, vector<1x1x8x128xf32>,
    %c0_228 = arith.constant 0 : index
    %c21 = arith.constant 21 : index
    %c0_229 = arith.constant 0 : index
    %c0_230 = arith.constant 0 : index
    %297 = vector.load %arg4[%c0_228, %c21, %c0_229, %c0_230] : memref<1x22x8x128xf32, #tpu.memory_space<vmem>>, vector<1x1x8x128xf32>
    %298 = vector.shape_cast %297 : vector<1x1x8x128xf32> to vector<8x128xf32>
    %299 = arith.addf %298, %170 : vector<8x128xf32>
    %c0_231 = arith.constant 0 : index
    %c21_232 = arith.constant 21 : index
    %c0_233 = arith.constant 0 : index
    %c0_234 = arith.constant 0 : index
    %300 = vector.load %arg4[%c0_231, %c21_232, %c0_233, %c0_234] : memref<1x22x8x128xf32, #tpu.memory_space<vmem>>, vector<1x1x8x128xf32>
    %301 = vector.shape_cast %300 : vector<1x1x8x128xf32> to vector<8x128xf32>
    %302 = vector.shape_cast %299 : vector<8x128xf32> to vector<1x1x8x128xf32>
    tpu.vector_store %arg4[%c0_231, %c21_232, %c0_233, %c0_234], %302 {strides = array<i32>} : memref<1x22x8x128xf32, #tpu.memory_space<vmem>>, vector<1x1x8x128xf32>,
    return
  }
  func.func @transform_0(%arg0: i32, %arg1: i32) -> (i32, i32, i32) {
    %c1_i32 = arith.constant 1 : i32
    %0 = arith.muli %arg0, %c1_i32 : i32
    %1 = arith.addi %0, %arg1 : i32
    %c0_i32 = arith.constant 0 : i32
    %2 = arith.minsi %1, %c0_i32 : i32
    %c0_i32_0 = arith.constant 0 : i32
    %c0_i32_1 = arith.constant 0 : i32
    %c0_i32_2 = arith.constant 0 : i32
    return %c0_i32_0, %c0_i32_1, %2 : i32, i32, i32
  }
  func.func @transform_1(%arg0: i32, %arg1: i32) -> (i32, i32, i32) {
    %c1_i32 = arith.constant 1 : i32
    %0 = arith.muli %arg0, %c1_i32 : i32
    %1 = arith.addi %0, %arg1 : i32
    %c0_i32 = arith.constant 0 : i32
    %2 = arith.minsi %1, %c0_i32 : i32
    %c0_i32_0 = arith.constant 0 : i32
    %c0_i32_1 = arith.constant 0 : i32
    %c0_i32_2 = arith.constant 0 : i32
    return %c0_i32_0, %c0_i32_1, %2 : i32, i32, i32
  }
  func.func @transform_2(%arg0: i32, %arg1: i32) -> (i32, i32, i32, i32) {
    %c0_i32 = arith.constant 0 : i32
    %c0_i32_0 = arith.constant 0 : i32
    %c0_i32_1 = arith.constant 0 : i32
    %c0_i32_2 = arith.constant 0 : i32
    return %arg0, %c0_i32, %c0_i32_0, %c0_i32_1 : i32, i32, i32, i32
  }
}

</mosaic_0001>

<llo_original>
// kernel: ghm_loss_forward.1
$region0: #{ghm_loss_forward.1}
  #allocation0 [shape = 'u32[]', space=smem, size = 0x4, offset = 0x4, fixed_abs, tag = 'smem constant byte address 0x4 - core index']
  #allocation1 [shape = 'u32[144,128]{1,0:T(1,128)}', space=vmem, size = 0x12000, scoped, tag = 'internal scratch']
  %s0 = inlined_call_operand.vmem [shape: f32[5,8,128], index: 0, kind: input, shape index: {}]
  %s1 = inlined_call_operand.vmem [shape: f32[5,8,128], index: 1, kind: input, shape index: {}]
  %s2 = inlined_call_operand.vmem [shape: f32[1,22,8,128], index: 2, kind: output, shape index: {}]
  %s3 = sld [smem:[#allocation0]]
  $region22: #{ghm_loss_forward.1} parent=0
    _
  %s5 = ssub.s32 1, %s3
  %s6 = scalar_select 0, %s5, %s3
  // Predicated region
  $region2: #{ghm_loss_forward.1} parent=0 // pred_check
    _
  $region3: #{ghm_loss_forward.1} parent=0 // pred_check_branch
    %8 = sbr.rel (0) target = $region5
  $region4: #{ghm_loss_forward.1} parent=0 // pred_region
    %s9 = sadd.s32 0, 0
    %p10 = scmp.lt.s32.totalorder %s9, 0
    %s11 = scalar_select %p10, %s9, 0
    %p12 = scmp.lt.s32.totalorder %s11, 0
    %s13 = scalar_select %p12, %s11, 0
    %s14 = smul.addr %s13, 8
    %s15 = scalar_lea.vmem %s0, %s14
    %s16 = sadd.s32 0, 0
    %p17 = scmp.lt.s32.totalorder %s16, 0
    %s18 = scalar_select %p17, %s16, 0
  $region5: #{ghm_loss_forward.1} parent=0 // pred_fallthru
    _
  // Predicated region
  $region6: #{ghm_loss_forward.1} parent=0 // pred_check
    _
  $region7: #{ghm_loss_forward.1} parent=0 // pred_check_branch
    %20 = sbr.rel (0) target = $region9
  $region8: #{ghm_loss_forward.1} parent=0 // pred_region
    %s21 = sadd.s32 0, 0
    %p22 = scmp.lt.s32.totalorder %s21, 0
    %s23 = scalar_select %p22, %s21, 0
    %p24 = scmp.lt.s32.totalorder %s23, 0
    %s25 = scalar_select %p24, %s23, 0
    %s26 = smul.addr %s25, 8
    %s27 = scalar_lea.vmem %s1, %s26
    %s28 = sadd.s32 0, 0
    %p29 = scmp.lt.s32.totalorder %s28, 0
    %s30 = scalar_select %p29, %s28, 0
  $region9: #{ghm_loss_forward.1} parent=0 // pred_fallthru
    _
  %s31 = sadd.s32 0, 0
  %p32 = scmp.lt.s32.totalorder %s31, 0
  %s33 = scalar_select %p32, %s31, 0
  %p34 = scmp.lt.s32.totalorder %s33, 0
  %s35 = scalar_select %p34, %s33, 0
  %s36 = smul.addr %s35, 8
  %s37 = scalar_lea.vmem %s0, %s36
  %s38 = sadd.s32 0, 0
  %p39 = scmp.lt.s32.totalorder %s38, 0
  %s40 = scalar_select %p39, %s38, 0
  %p41 = scmp.lt.s32.totalorder %s40, 0
  %s42 = scalar_select %p41, %s40, 0
  %s43 = smul.addr %s42, 8
  %s44 = scalar_lea.vmem %s1, %s43
  %s45 = sadd.s32 0, 0
  %p46 = scmp.lt.s32.totalorder %s45, 0
  %s47 = scalar_select %p46, %s45, 0
  %p48 = scmp.lt.s32.totalorder %s47, 0
  %s49 = scalar_select %p48, %s47, 0
  %s50 = smul.addr %s49, 8
  %s51 = scalar_lea.vmem %s0, %s50
  %s52 = sadd.s32 0, 0
  %p53 = scmp.lt.s32.totalorder %s52, 0
  %s54 = scalar_select %p53, %s52, 0
  %s55 = sadd.s32 0, 0
  %p56 = scmp.lt.s32.totalorder %s55, 0
  %s57 = scalar_select %p56, %s55, 0
  %p58 = scmp.lt.s32.totalorder %s57, 0
  %s59 = scalar_select %p58, %s57, 0
  %s60 = smul.addr %s59, 8
  %s61 = scalar_lea.vmem %s1, %s60
  %s62 = sadd.s32 0, 0
  %p63 = scmp.lt.s32.totalorder %s62, 0
  %s64 = scalar_select %p63, %s62, 0
  %p65 = scmp.eq.s32.totalorder 0, 0
  // Predicated region
  $region10: #{ghm_loss_forward.1} parent=0 // pred_check
    %p66 = pneg %p65
  $region11: #{ghm_loss_forward.1} parent=0 // pred_check_branch
    %68 = sbr.rel (%p66) target = $region13
  $region12: #{ghm_loss_forward.1} parent=0 // pred_region
    %69 = vst [vmem:[%s2] sm:$0xff] 0.0
    %70 = vst [vmem:[%s2 + $0x8] sm:$0xff] 0.0
    %71 = vst [vmem:[%s2 + $0x10] sm:$0xff] 0.0
    %72 = vst [vmem:[%s2 + $0x18] sm:$0xff] 0.0
    %73 = vst [vmem:[%s2 + $0x20] sm:$0xff] 0.0
    %74 = vst [vmem:[%s2 + $0x28] sm:$0xff] 0.0
    %75 = vst [vmem:[%s2 + $0x30] sm:$0xff] 0.0
    %76 = vst [vmem:[%s2 + $0x38] sm:$0xff] 0.0
    %77 = vst [vmem:[%s2 + $0x40] sm:$0xff] 0.0
    %78 = vst [vmem:[%s2 + $0x48] sm:$0xff] 0.0
    %79 = vst [vmem:[%s2 + $0x50] sm:$0xff] 0.0
    %80 = vst [vmem:[%s2 + $0x58] sm:$0xff] 0.0
    %81 = vst [vmem:[%s2 + $0x60] sm:$0xff] 0.0
    %82 = vst [vmem:[%s2 + $0x68] sm:$0xff] 0.0
    %83 = vst [vmem:[%s2 + $0x70] sm:$0xff] 0.0
    %84 = vst [vmem:[%s2 + $0x78] sm:$0xff] 0.0
    %85 = vst [vmem:[%s2 + $0x80] sm:$0xff] 0.0
    %86 = vst [vmem:[%s2 + $0x88] sm:$0xff] 0.0
    %87 = vst [vmem:[%s2 + $0x90] sm:$0xff] 0.0
    %88 = vst [vmem:[%s2 + $0x98] sm:$0xff] 0.0
    %89 = vst [vmem:[%s2 + $0xa0] sm:$0xff] 0.0
    %90 = vst [vmem:[%s2 + $0xa8] sm:$0xff] 0.0
  $region13: #{ghm_loss_forward.1} parent=0 // pred_fallthru
    _
  %v91 = vld [vmem:[%s51] sm:$0xff]
  %v92 = vld [vmem:[%s51 + $0x8] sm:$0xff]
  %v93 = vld [vmem:[%s51 + $0x10] sm:$0xff]
  %v94 = vld [vmem:[%s51 + $0x18] sm:$0xff]
  %v95 = vld [vmem:[%s51 + $0x20] sm:$0xff]
  %v96 = vld [vmem:[%s61] sm:$0xff]
  %v97 = vld [vmem:[%s61 + $0x8] sm:$0xff]
  %v98 = vld [vmem:[%s61 + $0x10] sm:$0xff]
  %v99 = vld [vmem:[%s61 + $0x18] sm:$0xff]
  %v100 = vld [vmem:[%s61 + $0x20] sm:$0xff]
  %vm101 = vcmp.gt.f32.partialorder %v96, 0.5
  %v102 = vsub.f32 1.0, %v91
  %v103 = vsel %vm101, %v91, %v102
  %v104 = vsel %vm101, 0.25, 0.75
  %v105 = vsub.f32 1.0, %v103
  %v106 = vsub.f32 0.0, %v104
  %v107 = vmul.f32 %v106, %v105
  %v108 = vmul.f32 %v107, %v105
  %v109 = vadd.f32 %v103, 1e-05
  %v110 = vlog2.pop %v109
  %v111 = vmul.f32 %v110, 0.6931472
  %v112 = vmul.f32 %v108, %v111
  %vm113 = vcmp.gt.f32.partialorder %v96, 0.1
  %v114 = vadd.f32 %v112, 0.0
  %v115 = vsel %vm113, 1.0, 0.0
  %v116 = vadd.f32 %v115, 0.0
  %v117 = vsub.f32 %v92, %v97
  %v118 = vsub.f32 %v93, %v98
  %v119 = vsub.f32 %v94, %v99
  %v120 = vsub.f32 %v95, %v100
  %v121 = vmul.f32 %v117, %v117
  %v122 = vmul.f32 %v118, %v118
  %v123 = vmul.f32 %v119, %v119
  %v124 = vmul.f32 %v120, %v120
  %v125 = vadd.f32 %v121, 0.0004
  %v126 = vadd.f32 %v122, 0.0004
  %v127 = vadd.f32 %v123, 0.0004
  %v128 = vadd.f32 %v124, 0.0004
  %v129 = vrsqrt.pop %v125
  %v130 = vrsqrt.pop %v126
  %v131 = vrsqrt.pop %v127
  %v132 = vrsqrt.pop %v128
  %v133 = vand.u32 2147483647, %v117
  %v134 = vand.u32 2147483647, %v118
  %v135 = vand.u32 2147483647, %v119
  %v136 = vand.u32 2147483647, %v120
  %v137 = vmul.f32 %v133, %v129
  %v138 = vmul.f32 %v134, %v130
  %v139 = vmul.f32 %v135, %v131
  %v140 = vmul.f32 %v136, %v132
  %v141 = vmul.f32 %v125, %v129
  %v142 = vmul.f32 %v126, %v130
  %v143 = vmul.f32 %v127, %v131
  %v144 = vmul.f32 %v128, %v132
  %v145 = vsub.f32 %v141, 0.02
  %v146 = vsub.f32 %v142, 0.02
  %v147 = vsub.f32 %v143, 0.02
  %v148 = vsub.f32 %v144, 0.02
  %v149 = vmul.f32 %v137, 10.0
  %v150 = vmul.f32 %v138, 10.0
  %v151 = vmul.f32 %v139, 10.0
  %v152 = vmul.f32 %v140, 10.0
  %v153 = vfloor.f32 %v149
  %v154 = vfloor.f32 %v150
  %v155 = vfloor.f32 %v151
  %v156 = vfloor.f32 %v152
  %v157 = vmin.f32 %v153, 9.0
  %v158 = vmin.f32 %v154, 9.0
  %v159 = vmin.f32 %v155, 9.0
  %v160 = vmin.f32 %v156, 9.0
  %v161 = vsel %vm113, 1, 0
  %vm162 = vcmp.eq.s32.totalorder %v161, 1
  %v163 = vsel %vm162, %v157, -1.0
  %v164 = vsel %vm162, %v158, -1.0
  %v165 = vsel %vm162, %v159, -1.0
  %v166 = vsel %vm162, %v160, -1.0
  %vm167 = vcmp.eq.f32.partialorder %v163, 0.0
  %vm168 = vcmp.eq.f32.partialorder %v164, 0.0
  %vm169 = vcmp.eq.f32.partialorder %v165, 0.0
  %vm170 = vcmp.eq.f32.partialorder %v166, 0.0
  %v171 = vsel %vm167, 1.0, 0.0
  %v172 = vsel %vm168, 1.0, 0.0
  %v173 = vsel %vm169, 1.0, 0.0
  %v174 = vsel %vm170, 1.0, 0.0
  %v175 = vadd.f32 %v171, %v172
  %v176 = vadd.f32 %v175, %v173
  %v177 = vadd.f32 %v176, %v174
  %v178 = vadd.f32 %v177, 0.0
  %v179 = vsel %vm167, %v145, 0.0
  %v180 = vsel %vm168, %v146, 0.0
  %v181 = vsel %vm169, %v147, 0.0
  %v182 = vsel %vm170, %v148, 0.0
  %v183 = vadd.f32 %v179, %v180
  %v184 = vadd.f32 %v183, %v181
  %v185 = vadd.f32 %v184, %v182
  %v186 = vadd.f32 %v185, 0.0
  %vm187 = vcmp.eq.f32.partialorder %v163, 1.0
  %vm188 = vcmp.eq.f32.partialorder %v164, 1.0
  %vm189 = vcmp.eq.f32.partialorder %v165, 1.0
  %vm190 = vcmp.eq.f32.partialorder %v166, 1.0
  %v191 = vsel %vm187, 1.0, 0.0
  %v192 = vsel %vm188, 1.0, 0.0
  %v193 = vsel %vm189, 1.0, 0.0
  %v194 = vsel %vm190, 1.0, 0.0
  %v195 = vadd.f32 %v191, %v192
  %v196 = vadd.f32 %v195, %v193
  %v197 = vadd.f32 %v196, %v194
  %v198 = vadd.f32 %v197, 0.0
  %v199 = vsel %vm187, %v145, 0.0
  %v200 = vsel %vm188, %v146, 0.0
  %v201 = vsel %vm189, %v147, 0.0
  %v202 = vsel %vm190, %v148, 0.0
  %v203 = vadd.f32 %v199, %v200
  %v204 = vadd.f32 %v203, %v201
  %v205 = vadd.f32 %v204, %v202
  %v206 = vadd.f32 %v205, 0.0
  %vm207 = vcmp.eq.f32.partialorder %v163, 2.0
  %vm208 = vcmp.eq.f32.partialorder %v164, 2.0
  %vm209 = vcmp.eq.f32.partialorder %v165, 2.0
  %vm210 = vcmp.eq.f32.partialorder %v166, 2.0
  %v211 = vsel %vm207, 1.0, 0.0
  %v212 = vsel %vm208, 1.0, 0.0
  %v213 = vsel %vm209, 1.0, 0.0
  %v214 = vsel %vm210, 1.0, 0.0
  %v215 = vadd.f32 %v211, %v212
  %v216 = vadd.f32 %v215, %v213
  %v217 = vadd.f32 %v216, %v214
  %v218 = vadd.f32 %v217, 0.0
  %v219 = vsel %vm207, %v145, 0.0
  %v220 = vsel %vm208, %v146, 0.0
  %v221 = vsel %vm209, %v147, 0.0
  %v222 = vsel %vm210, %v148, 0.0
  %v223 = vadd.f32 %v219, %v220
  %v224 = vadd.f32 %v223, %v221
  %v225 = vadd.f32 %v224, %v222
  %v226 = vadd.f32 %v225, 0.0
  %vm227 = vcmp.eq.f32.partialorder %v163, 3.0
  %vm228 = vcmp.eq.f32.partialorder %v164, 3.0
  %vm229 = vcmp.eq.f32.partialorder %v165, 3.0
  %vm230 = vcmp.eq.f32.partialorder %v166, 3.0
  %v231 = vsel %vm227, 1.0, 0.0
  %v232 = vsel %vm228, 1.0, 0.0
  %v233 = vsel %vm229, 1.0, 0.0
  %v234 = vsel %vm230, 1.0, 0.0
  %v235 = vadd.f32 %v231, %v232
  %v236 = vadd.f32 %v235, %v233
  %v237 = vadd.f32 %v236, %v234
  %v238 = vadd.f32 %v237, 0.0
  %v239 = vsel %vm227, %v145, 0.0
  %v240 = vsel %vm228, %v146, 0.0
  %v241 = vsel %vm229, %v147, 0.0
  %v242 = vsel %vm230, %v148, 0.0
  %v243 = vadd.f32 %v239, %v240
  %v244 = vadd.f32 %v243, %v241
  %v245 = vadd.f32 %v244, %v242
  %v246 = vadd.f32 %v245, 0.0
  %vm247 = vcmp.eq.f32.partialorder %v163, 4.0
  %vm248 = vcmp.eq.f32.partialorder %v164, 4.0
  %vm249 = vcmp.eq.f32.partialorder %v165, 4.0
  %vm250 = vcmp.eq.f32.partialorder %v166, 4.0
  %v251 = vsel %vm247, 1.0, 0.0
  %v252 = vsel %vm248, 1.0, 0.0
  %v253 = vsel %vm249, 1.0, 0.0
  %v254 = vsel %vm250, 1.0, 0.0
  %v255 = vadd.f32 %v251, %v252
  %v256 = vadd.f32 %v255, %v253
  %v257 = vadd.f32 %v256, %v254
  %v258 = vadd.f32 %v257, 0.0
  %v259 = vsel %vm247, %v145, 0.0
  %v260 = vsel %vm248, %v146, 0.0
  %v261 = vsel %vm249, %v147, 0.0
  %v262 = vsel %vm250, %v148, 0.0
  %v263 = vadd.f32 %v259, %v260
  %v264 = vadd.f32 %v263, %v261
  %v265 = vadd.f32 %v264, %v262
  %v266 = vadd.f32 %v265, 0.0
  %vm267 = vcmp.eq.f32.partialorder %v163, 5.0
  %vm268 = vcmp.eq.f32.partialorder %v164, 5.0
  %vm269 = vcmp.eq.f32.partialorder %v165, 5.0
  %vm270 = vcmp.eq.f32.partialorder %v166, 5.0
  %v271 = vsel %vm267, 1.0, 0.0
  %v272 = vsel %vm268, 1.0, 0.0
  %v273 = vsel %vm269, 1.0, 0.0
  %v274 = vsel %vm270, 1.0, 0.0
  %v275 = vadd.f32 %v271, %v272
  %v276 = vadd.f32 %v275, %v273
  %v277 = vadd.f32 %v276, %v274
  %v278 = vadd.f32 %v277, 0.0
  %v279 = vsel %vm267, %v145, 0.0
  %v280 = vsel %vm268, %v146, 0.0
  %v281 = vsel %vm269, %v147, 0.0
  %v282 = vsel %vm270, %v148, 0.0
  %v283 = vadd.f32 %v279, %v280
  %v284 = vadd.f32 %v283, %v281
  %v285 = vadd.f32 %v284, %v282
  %v286 = vadd.f32 %v285, 0.0
  %vm287 = vcmp.eq.f32.partialorder %v163, 6.0
  %vm288 = vcmp.eq.f32.partialorder %v164, 6.0
  %vm289 = vcmp.eq.f32.partialorder %v165, 6.0
  %vm290 = vcmp.eq.f32.partialorder %v166, 6.0
  %v291 = vsel %vm287, 1.0, 0.0
  %v292 = vsel %vm288, 1.0, 0.0
  %v293 = vsel %vm289, 1.0, 0.0
  %v294 = vsel %vm290, 1.0, 0.0
  %v295 = vadd.f32 %v291, %v292
  %v296 = vadd.f32 %v295, %v293
  %v297 = vadd.f32 %v296, %v294
  %v298 = vadd.f32 %v297, 0.0
  %v299 = vsel %vm287, %v145, 0.0
  %v300 = vsel %vm288, %v146, 0.0
  %v301 = vsel %vm289, %v147, 0.0
  %v302 = vsel %vm290, %v148, 0.0
  %v303 = vadd.f32 %v299, %v300
  %v304 = vadd.f32 %v303, %v301
  %v305 = vadd.f32 %v304, %v302
  %v306 = vadd.f32 %v305, 0.0
  %vm307 = vcmp.eq.f32.partialorder %v163, 7.0
  %vm308 = vcmp.eq.f32.partialorder %v164, 7.0
  %vm309 = vcmp.eq.f32.partialorder %v165, 7.0
  %vm310 = vcmp.eq.f32.partialorder %v166, 7.0
  %v311 = vsel %vm307, 1.0, 0.0
  %v312 = vsel %vm308, 1.0, 0.0
  %v313 = vsel %vm309, 1.0, 0.0
  %v314 = vsel %vm310, 1.0, 0.0
  %v315 = vadd.f32 %v311, %v312
  %v316 = vadd.f32 %v315, %v313
  %v317 = vadd.f32 %v316, %v314
  %v318 = vadd.f32 %v317, 0.0
  %v319 = vsel %vm307, %v145, 0.0
  %v320 = vsel %vm308, %v146, 0.0
  %v321 = vsel %vm309, %v147, 0.0
  %v322 = vsel %vm310, %v148, 0.0
  %v323 = vadd.f32 %v319, %v320
  %v324 = vadd.f32 %v323, %v321
  %v325 = vadd.f32 %v324, %v322
  %v326 = vadd.f32 %v325, 0.0
  %vm327 = vcmp.eq.f32.partialorder %v163, 8.0
  %vm328 = vcmp.eq.f32.partialorder %v164, 8.0
  %vm329 = vcmp.eq.f32.partialorder %v165, 8.0
  %vm330 = vcmp.eq.f32.partialorder %v166, 8.0
  %v331 = vsel %vm327, 1.0, 0.0
  %v332 = vsel %vm328, 1.0, 0.0
  %v333 = vsel %vm329, 1.0, 0.0
  %v334 = vsel %vm330, 1.0, 0.0
  %v335 = vadd.f32 %v331, %v332
  %v336 = vadd.f32 %v335, %v333
  %v337 = vadd.f32 %v336, %v334
  %v338 = vadd.f32 %v337, 0.0
  %v339 = vsel %vm327, %v145, 0.0
  %v340 = vsel %vm328, %v146, 0.0
  %v341 = vsel %vm329, %v147, 0.0
  %v342 = vsel %vm330, %v148, 0.0
  %v343 = vadd.f32 %v339, %v340
  %v344 = vadd.f32 %v343, %v341
  %v345 = vadd.f32 %v344, %v342
  %v346 = vadd.f32 %v345, 0.0
  %vm347 = vcmp.eq.f32.partialorder %v163, 9.0
  %vm348 = vcmp.eq.f32.partialorder %v164, 9.0
  %vm349 = vcmp.eq.f32.partialorder %v165, 9.0
  %vm350 = vcmp.eq.f32.partialorder %v166, 9.0
  %v351 = vsel %vm347, 1.0, 0.0
  %v352 = vsel %vm348, 1.0, 0.0
  %v353 = vsel %vm349, 1.0, 0.0
  %v354 = vsel %vm350, 1.0, 0.0
  %v355 = vadd.f32 %v351, %v352
  %v356 = vadd.f32 %v355, %v353
  %v357 = vadd.f32 %v356, %v354
  %v358 = vadd.f32 %v357, 0.0
  %v359 = vsel %vm347, %v145, 0.0
  %v360 = vsel %vm348, %v146, 0.0
  %v361 = vsel %vm349, %v147, 0.0
  %v362 = vsel %vm350, %v148, 0.0
  %v363 = vadd.f32 %v359, %v360
  %v364 = vadd.f32 %v363, %v361
  %v365 = vadd.f32 %v364, %v362
  %v366 = vadd.f32 %v365, 0.0
  %v367 = vld [vmem:[%s2] sm:$0xff]
  %v368 = vadd.f32 %v367, %v114
  %369 = vst [vmem:[%s2] sm:$0xff] %v368
  %s370 = scalar_lea.vmem %s2, 8
  %v371 = vld [vmem:[%s370] sm:$0xff]
  %v372 = vadd.f32 %v371, %v116
  %373 = vst [vmem:[%s370] sm:$0xff] %v372
  %s374 = scalar_lea.vmem %s2, 16
  %v375 = vld [vmem:[%s374] sm:$0xff]
  %v376 = vadd.f32 %v375, %v178
  %377 = vst [vmem:[%s374] sm:$0xff] %v376
  %s378 = scalar_lea.vmem %s2, 96
  %v379 = vld [vmem:[%s378] sm:$0xff]
  %v380 = vadd.f32 %v379, %v186
  %381 = vst [vmem:[%s378] sm:$0xff] %v380
  %s382 = scalar_lea.vmem %s2, 24
  %v383 = vld [vmem:[%s382] sm:$0xff]
  %v384 = vadd.f32 %v383, %v198
  %385 = vst [vmem:[%s382] sm:$0xff] %v384
  %s386 = scalar_lea.vmem %s2, 104
  %v387 = vld [vmem:[%s386] sm:$0xff]
  %v388 = vadd.f32 %v387, %v206
  %389 = vst [vmem:[%s386] sm:$0xff] %v388
  %s390 = scalar_lea.vmem %s2, 32
  %v391 = vld [vmem:[%s390] sm:$0xff]
  %v392 = vadd.f32 %v391, %v218
  %393 = vst [vmem:[%s390] sm:$0xff] %v392
  %s394 = scalar_lea.vmem %s2, 112
  %v395 = vld [vmem:[%s394] sm:$0xff]
  %v396 = vadd.f32 %v395, %v226
  %397 = vst [vmem:[%s394] sm:$0xff] %v396
  %s398 = scalar_lea.vmem %s2, 40
  %v399 = vld [vmem:[%s398] sm:$0xff]
  %v400 = vadd.f32 %v399, %v238
  %401 = vst [vmem:[%s398] sm:$0xff] %v400
  %s402 = scalar_lea.vmem %s2, 120
  %v403 = vld [vmem:[%s402] sm:$0xff]
  %v404 = vadd.f32 %v403, %v246
  %405 = vst [vmem:[%s402] sm:$0xff] %v404
  %s406 = scalar_lea.vmem %s2, 48
  %v407 = vld [vmem:[%s406] sm:$0xff]
  %v408 = vadd.f32 %v407, %v258
  %409 = vst [vmem:[%s406] sm:$0xff] %v408
  %s410 = scalar_lea.vmem %s2, 128
  %v411 = vld [vmem:[%s410] sm:$0xff]
  %v412 = vadd.f32 %v411, %v266
  %413 = vst [vmem:[%s410] sm:$0xff] %v412
  %s414 = scalar_lea.vmem %s2, 56
  %v415 = vld [vmem:[%s414] sm:$0xff]
  %v416 = vadd.f32 %v415, %v278
  %417 = vst [vmem:[%s414] sm:$0xff] %v416
  %s418 = scalar_lea.vmem %s2, 136
  %v419 = vld [vmem:[%s418] sm:$0xff]
  %v420 = vadd.f32 %v419, %v286
  %421 = vst [vmem:[%s418] sm:$0xff] %v420
  %s422 = scalar_lea.vmem %s2, 64
  %v423 = vld [vmem:[%s422] sm:$0xff]
  %v424 = vadd.f32 %v423, %v298
  %425 = vst [vmem:[%s422] sm:$0xff] %v424
  %s426 = scalar_lea.vmem %s2, 144
  %v427 = vld [vmem:[%s426] sm:$0xff]
  %v428 = vadd.f32 %v427, %v306
  %429 = vst [vmem:[%s426] sm:$0xff] %v428
  %s430 = scalar_lea.vmem %s2, 72
  %v431 = vld [vmem:[%s430] sm:$0xff]
  %v432 = vadd.f32 %v431, %v318
  %433 = vst [vmem:[%s430] sm:$0xff] %v432
  %s434 = scalar_lea.vmem %s2, 152
  %v435 = vld [vmem:[%s434] sm:$0xff]
  %v436 = vadd.f32 %v435, %v326
  %437 = vst [vmem:[%s434] sm:$0xff] %v436
  %s438 = scalar_lea.vmem %s2, 80
  %v439 = vld [vmem:[%s438] sm:$0xff]
  %v440 = vadd.f32 %v439, %v338
  %441 = vst [vmem:[%s438] sm:$0xff] %v440
  %s442 = scalar_lea.vmem %s2, 160
  %v443 = vld [vmem:[%s442] sm:$0xff]
  %v444 = vadd.f32 %v443, %v346
  %445 = vst [vmem:[%s442] sm:$0xff] %v444
  %s446 = scalar_lea.vmem %s2, 88
  %v447 = vld [vmem:[%s446] sm:$0xff]
  %v448 = vadd.f32 %v447, %v358
  %449 = vst [vmem:[%s446] sm:$0xff] %v448
  %s450 = scalar_lea.vmem %s2, 168
  %v451 = vld [vmem:[%s450] sm:$0xff]
  %v452 = vadd.f32 %v451, %v366
  %453 = vst [vmem:[%s450] sm:$0xff] %v452
  // Predicated region
  $region14: #{ghm_loss_forward.1} parent=0 // pred_check
    _
  $region15: #{ghm_loss_forward.1} parent=0 // pred_check_branch
    %455 = sbr.rel (0) target = $region17
  $region16: #{ghm_loss_forward.1} parent=0 // pred_region
    _
  $region17: #{ghm_loss_forward.1} parent=0 // pred_fallthru
    _
  // Predicated region
  $region18: #{ghm_loss_forward.1} parent=0 // pred_check
    _
  $region19: #{ghm_loss_forward.1} parent=0 // pred_check_branch
    %457 = sbr.rel (0) target = $region21
  $region20: #{ghm_loss_forward.1} parent=0 // pred_region
    _
  $region21: #{ghm_loss_forward.1} parent=0 // pred_fallthru
    _

</llo_original>
